<compile_context>
chip_gen: v7x
topology: tpu7x:2x2x1
jax: 0.10.0
libtpu: 0.0.40
codegen_flags: <defaults>
</compile_context>

<pallas_src>
import functools

import jax
import jax.numpy as jnp
from jax import lax
from jax.experimental import pallas as pl
from jax.experimental.pallas import tpu as pltpu


def _round_up(x, m):
    return (x + m - 1) // m * m


def _vmem_limit_bytes():
    """Scoped-VMEM request: 64 MiB on 128-MiB parts (v5e/v6e), ~48 MiB on v7x."""
    try:
        cap = int(pltpu.get_tpu_info().vmem_capacity_bytes)
    except Exception:  # non-TPU backend / API drift: assume a 128-MiB part
        cap = 128 * 1024 * 1024
    return int(min(64 * 1024 * 1024, cap * 3 // 4))


# ---------------------------------------------------------------------------
# Kernels
# ---------------------------------------------------------------------------
def _qkv_proj_kernel(x_ref, w_in_ref, b_in_ref, wd_ref, bd_ref, wu_ref, bu_ref,
                     q_ref, k_ref, v_ref):
    """qkv = x @ W_in' + b_in' + lora1'(x), split into q/k/v.

    SSF scale/shift, the LoRA learnable scale and the q 1/sqrt(hd) scaling are
    already folded into the (pre-transposed, bf16) weights and (f32) biases, so
    this is matmul + bias + ReLU only.  One row tile per grid step; the weight
    blocks have constant index maps (DMA'd once, VMEM-resident).
    """
    x = x_ref[...]                                                     # (TN, E) bf16
    base = jnp.dot(x, w_in_ref[...], preferred_element_type=jnp.float32) + b_in_ref[...]
    down = jnp.maximum(
        jnp.dot(x, wd_ref[...], preferred_element_type=jnp.float32) + bd_ref[...],
        0.0)                                                           # (TN, Rp) ReLU
    adapt = jnp.dot(down.astype(jnp.bfloat16), wu_ref[...],
                    preferred_element_type=jnp.float32) + bu_ref[...]
    qkv = base + adapt                                                 # (TN, 3E) f32
    e = q_ref.shape[-1]
    q_ref[...] = qkv[:, :e].astype(q_ref.dtype)
    k_ref[...] = qkv[:, e:2 * e].astype(k_ref.dtype)
    v_ref[...] = qkv[:, 2 * e:].astype(v_ref.dtype)


def _attn_out_proj_kernel(q_ref, k_ref, v_ref, wo_ref, bo_ref,
                          wd_ref, bd_ref, wu_ref, bu_ref, o_ref, a_scr,
                          *, num_heads):
    """softmax(q @ k^T) @ v for all heads of one batch element, fused with the
    out-projection (W_o + SSF folded) + lora2 epilogue.

    q is pre-scaled by 1/sqrt(head_dim) (folded into the in-projection), so no
    per-score multiply is needed.  Each head's (L, hd) result is stored into the
    VMEM scratch slab immediately (bounded live ranges, no concatenate).
    """
    q = q_ref[0]                                                       # (L, E) bf16
    k = k_ref[0]
    v = v_ref[0]
    hd = q.shape[-1] // num_heads
    for h in range(num_heads):
        sl = slice(h * hd, (h + 1) * hd)
        # Contract the last dim of both operands -> no k transpose materialized.
        s = lax.dot_general(q[:, sl], k[:, sl],
                            dimension_numbers=(((1,), (1,)), ((), ())),
                            preferred_element_type=jnp.float32)        # (L, L) f32
        s = s - jnp.max(s, axis=-1, keepdims=True)
        p = jnp.exp(s)
        # approx reciprocal on the EUP (~1e-3 rel err); fine for inference,
        # gate it for loss-sensitive paths.
        p = p * pl.reciprocal(jnp.sum(p, axis=-1, keepdims=True), approx=True)
        a_scr[:, sl] = jnp.dot(p.astype(v.dtype), v[:, sl],
                               preferred_element_type=jnp.float32).astype(a_scr.dtype)

    a = a_scr[...]                                                     # (L, E) bf16
    # out-projection (SSF folded into wo/bo) + lora2 (learnable scale folded).
    y = jnp.dot(a, wo_ref[...], preferred_element_type=jnp.float32) + bo_ref[...]
    down = jnp.maximum(
        jnp.dot(a, wd_ref[...], preferred_element_type=jnp.float32) + bd_ref[...],
        0.0)
    adapt = jnp.dot(down.astype(jnp.bfloat16), wu_ref[...],
                    preferred_element_type=jnp.float32) + bu_ref[...]
    o_ref[0] = (y + adapt).astype(o_ref.dtype)                         # lane-dense store


# ---------------------------------------------------------------------------
# One-time parameter prep (HBM side): fold SSF / LoRA scales / q-scaling into
# the weights, transpose, cast to bf16, lane-pad the LoRA bottleneck.
# ---------------------------------------------------------------------------
def _prep_params(params, num_heads, lane=128):
    E = params["out_proj_weight"].shape[0]
    hd = E // num_heads
    scaling = float(hd) ** -0.5
    r = params["lora1_down_w"].shape[0]
    rp = _round_up(r, lane)                       # pad bottleneck 64 -> 128 lanes

    f32 = lambda a: jnp.asarray(a, jnp.float32)
    s1, sh1 = f32(params["ssf_scale_1"]), f32(params["ssf_shift_1"])   # (3E,)
    s2, sh2 = f32(params["ssf_scale_2"]), f32(params["ssf_shift_2"])   # (E,)
    l1s = f32(params["lora1_scale"]).reshape(())
    l2s = f32(params["lora2_scale"]).reshape(())

    # q = q * scaling is applied AFTER ssf and AFTER the lora1 add in the torch
    # code, so the first-E output channels of BOTH the base and lora1-up paths
    # get the factor.
    qscale = jnp.concatenate([jnp.full((E,), scaling, jnp.float32),
                              jnp.ones((2 * E,), jnp.float32)])

    # in-projection:  ssf(x W^T + b) -> x (W^T * s1) + (b*s1 + sh1), then *qscale.
    w_in_t = (f32(params["in_proj_weight"]).T * (s1 * qscale)[None, :]).astype(jnp.bfloat16)
    b_in = ((f32(params["in_proj_bias"]) * s1 + sh1) * qscale).reshape(1, -1)

    # lora1 (E -> R -> 3E): fold learnable scale + q-scaling into the up proj.
    l1_dw = jnp.pad(f32(params["lora1_down_w"]).T, ((0, 0), (0, rp - r))).astype(jnp.bfloat16)
    l1_db = jnp.pad(f32(params["lora1_down_b"]), (0, rp - r)).reshape(1, -1)
    l1_uw = jnp.pad(f32(params["lora1_up_w"]).T * (l1s * qscale)[None, :],
                    ((0, rp - r), (0, 0))).astype(jnp.bfloat16)
    l1_ub = (f32(params["lora1_up_b"]) * l1s * qscale).reshape(1, -1)

    # out-projection with SSF fold (lora2 adapt is added after SSF -> not scaled).
    w_out_t = (f32(params["out_proj_weight"]).T * s2[None, :]).astype(jnp.bfloat16)
    b_out = (f32(params["out_proj_bias"]) * s2 + sh2).reshape(1, -1)

    # lora2 (E -> R -> E): fold learnable scale into the up proj.
    l2_dw = jnp.pad(f32(params["lora2_down_w"]).T, ((0, 0), (0, rp - r))).astype(jnp.bfloat16)
    l2_db = jnp.pad(f32(params["lora2_down_b"]), (0, rp - r)).reshape(1, -1)
    l2_uw = jnp.pad(f32(params["lora2_up_w"]).T * l2s, ((0, rp - r), (0, 0))).astype(jnp.bfloat16)
    l2_ub = (f32(params["lora2_up_b"]) * l2s).reshape(1, -1)

    return dict(rp=rp, w_in_t=w_in_t, b_in=b_in,
                l1_dw=l1_dw, l1_db=l1_db, l1_uw=l1_uw, l1_ub=l1_ub,
                w_out_t=w_out_t, b_out=b_out,
                l2_dw=l2_dw, l2_db=l2_db, l2_uw=l2_uw, l2_ub=l2_ub)


# ---------------------------------------------------------------------------
# Wrapper
# ---------------------------------------------------------------------------
def multihead_attention_forward(query, params, num_heads, *, row_tile=None,
                                out_dtype=jnp.float32):
    L, B, E = query.shape
    H = num_heads
    N = B * L

    p = _prep_params(params, num_heads)
    rp = p["rp"]

    vmem_limit = _vmem_limit_bytes()
    if row_tile is None:
        # 128-MiB parts (v5e/v6e): 1024-row tiles amortize per-step overhead;
        # v7x (64 MiB VMEM): stay at 512.
        row_tile = 1024 if vmem_limit >= 64 * 1024 * 1024 else 512

    # Single layout pass: (L, B, E) -> (B, L, E) -> (N, E), row = b*L + l.
    # Every reshape between kernels below is metadata-only (no HBM round trip).
    x = query.transpose(1, 0, 2).reshape(N, E).astype(jnp.bfloat16)

    tn = min(row_tile, _round_up(N, 8))
    n_row_blocks = pl.cdiv(N, tn)
    # NOTE: if N is not a multiple of tn the last block's padded rows run through
    # the (bounded) matmul/ReLU epilogue; their stores are masked, so the result
    # is correct.
    row_spec = pl.BlockSpec((tn, E), lambda i: (i, 0))
    const = lambda shape: pl.BlockSpec(shape, lambda i: (0, 0))      # VMEM-resident
    proj_params = pltpu.CompilerParams(
        dimension_semantics=("parallel",),
        vmem_limit_bytes=vmem_limit)

    # --- in-projection (+ folded SSF / lora1 / q-scaling), split into q/k/v ---
    q, k, v = pl.pallas_call(
        _qkv_proj_kernel,
        out_shape=tuple(jax.ShapeDtypeStruct((N, E), jnp.bfloat16) for _ in range(3)),
        grid=(n_row_blocks,),
        in_specs=[
            row_spec,
            const((E, 3 * E)), const((1, 3 * E)),        # folded W_in^T, b_in
            const((E, rp)), const((1, rp)),              # lora1 down (lane-padded)
            const((rp, 3 * E)), const((1, 3 * E)),       # lora1 up (scale folded)
        ],
        out_specs=(row_spec, row_spec, row_spec),
        compiler_params=proj_params,
    )(x, p["w_in_t"], p["b_in"], p["l1_dw"], p["l1_db"], p["l1_uw"], p["l1_ub"])

    # --- attention (all heads of one batch element) fused with out-projection --
    blk = pl.BlockSpec((1, L, E), lambda b: (b, 0, 0))
    wconst = lambda shape: pl.BlockSpec(shape, lambda b: (0, 0))
    out = pl.pallas_call(
        functools.partial(_attn_out_proj_kernel, num_heads=H),
        out_shape=jax.ShapeDtypeStruct((B, L, E), out_dtype),
        grid=(B,),
        in_specs=[
            blk, blk, blk,
            wconst((E, E)), wconst((1, E)),              # folded W_o^T, b_o
            wconst((E, rp)), wconst((1, rp)),            # lora2 down (lane-padded)
            wconst((rp, E)), wconst((1, E)),             # lora2 up (scale folded)
        ],
        out_specs=blk,
        scratch_shapes=[pltpu.VMEM((L, E), jnp.bfloat16)],
        compiler_params=pltpu.CompilerParams(
            dimension_semantics=("parallel",),
            vmem_limit_bytes=vmem_limit),
    )(q.reshape(B, L, E), k.reshape(B, L, E), v.reshape(B, L, E),
      p["w_out_t"], p["b_out"], p["l2_dw"], p["l2_db"], p["l2_uw"], p["l2_ub"])

    # (B, L, E) -> (L, B, E): PyTorch return layout (attn weights are None).
    return out.transpose(1, 0, 2)


# ---------------------------------------------------------------------------
# Pure-JAX f32 reference (mirrors multi_head_attention_forward with dropout=0,
# no mask, add_zero_attn=False — the module's defaults)
# ---------------------------------------------------------------------------
def reference_forward(query, params, num_heads):
    L, B, E = query.shape
    H = num_heads
    hd = E // H
    scaling = float(hd) ** -0.5
    x = query
    qkv = x @ params["in_proj_weight"].T + params["in_proj_bias"]
    qkv = qkv * params["ssf_scale_1"] + params["ssf_shift_1"]
    down = jax.nn.relu(x @ params["lora1_down_w"].T + params["lora1_down_b"])
    qkv = qkv + (down @ params["lora1_up_w"].T + params["lora1_up_b"]) * params["lora1_scale"][0]
    q, k, v = jnp.split(qkv, 3, axis=-1)
    q = q * scaling
    heads = lambda t: t.reshape(L, B * H, hd).transpose(1, 0, 2)
    q, k, v = heads(q), heads(k), heads(v)
    w = jax.nn.softmax(jnp.einsum('bld,bmd->blm', q, k), axis=-1)
    o = jnp.einsum('blm,bmd->bld', w, v).transpose(1, 0, 2).reshape(L, B, E)
    down2 = jax.nn.relu(o @ params["lora2_down_w"].T + params["lora2_down_b"])
    adapt2 = (down2 @ params["lora2_up_w"].T + params["lora2_up_b"]) * params["lora2_scale"][0]
    y = o @ params["out_proj_weight"].T + params["out_proj_bias"]
    y = y * params["ssf_scale_2"] + params["ssf_shift_2"]
    return y + adapt2


# ---------------------------------------------------------------------------
def make_params(key, embed_dim, bottleneck=64):
    E, R = embed_dim, bottleneck
    ks = jax.random.split(key, 16)
    n = lambda k, shape, s=0.02: (s * jax.random.normal(k, shape)).astype(jnp.float32)
    return {
        "in_proj_weight": n(ks[0], (3 * E, E), 0.05),
        "in_proj_bias":   n(ks[1], (3 * E,)),
        "out_proj_weight": n(ks[2], (E, E), 0.05),
        "out_proj_bias":   n(ks[3], (E,)),
        "ssf_scale_1": 1.0 + n(ks[4], (3 * E,)),
        "ssf_shift_1": n(ks[5], (3 * E,)),
        "ssf_scale_2": 1.0 + n(ks[6], (E,)),
        "ssf_shift_2": n(ks[7], (E,)),
        # lora1 (Adapter: E -> 64 -> 3E) — random instead of zero-init so the
        # adapter path is actually exercised.
        "lora1_down_w": n(ks[8], (R, E), 0.05),
        "lora1_down_b": n(ks[9], (R,)),
        "lora1_up_w":   n(ks[10], (3 * E, R), 0.05),
        "lora1_up_b":   n(ks[11], (3 * E,)),
        "lora1_scale":  jnp.ones((1,), jnp.float32),
        # lora2 (Adapter: E -> 64 -> E)
        "lora2_down_w": n(ks[12], (R, E), 0.05),
        "lora2_down_b": n(ks[13], (R,)),
        "lora2_up_w":   n(ks[14], (E, R), 0.05),
        "lora2_up_b":   n(ks[15], (E,)),
        "lora2_scale":  jnp.ones((1,), jnp.float32),
    }


if __name__ == "__main__":
    # Small shapes: seq=8, batch=2, embed=32, heads=4 (head_dim=8)
    L, B, E, H = 8, 2, 32, 4
    key = jax.random.PRNGKey(0)
    kq, kp = jax.random.split(key)
    query = jax.random.normal(kq, (L, B, E), dtype=jnp.float32)
    params = make_params(kp, E)

    out = multihead_attention_forward(query, params, num_heads=H)
    out = jax.block_until_ready(out)
    assert out.shape == (L, B, E)

    ref = reference_forward(query, params, num_heads=H)
    err = float(jnp.max(jnp.abs(out - ref)))
    # bf16 MXU operands (SSF/LoRA scales folded into bf16 weights) + EUP
    # approx-reciprocal softmax vs. an all-f32 reference.
    assert jnp.allclose(out, ref, atol=3e-2, rtol=3e-2), err

    print("KERNEL_OK")
</pallas_src>

<mosaic_0001>
module attributes {stable_mosaic.version = 11 : i64} {
  func.func @_qkv_proj_kernel(%arg0: i32, %arg1: memref<16x32xbf16, #tpu.memory_space<vmem>>, %arg2: memref<32x96xbf16, #tpu.memory_space<vmem>>, %arg3: memref<1x96xf32, #tpu.memory_space<vmem>>, %arg4: memref<32x128xbf16, #tpu.memory_space<vmem>>, %arg5: memref<1x128xf32, #tpu.memory_space<vmem>>, %arg6: memref<128x96xbf16, #tpu.memory_space<vmem>>, %arg7: memref<1x96xf32, #tpu.memory_space<vmem>>, %arg8: memref<16x32xbf16, #tpu.memory_space<vmem>>, %arg9: memref<16x32xbf16, #tpu.memory_space<vmem>>, %arg10: memref<16x32xbf16, #tpu.memory_space<vmem>>) attributes {dimension_semantics = [#tpu.dimension_semantics<parallel>], iteration_bounds = array<i64: 1>, scalar_prefetch = 0 : i64, scratch_operands = 0 : i64, tpu.core_type = #tpu.core_type<tc>, window_params = [{transform_indices = @transform_0, window_bounds = array<i64: 16, 32>}, {pipeline_mode = #tpu.pipeline_mode<synchronous>, transform_indices = @transform_1, window_bounds = array<i64: 32, 96>}, {pipeline_mode = #tpu.pipeline_mode<synchronous>, transform_indices = @transform_2, window_bounds = array<i64: 1, 96>}, {pipeline_mode = #tpu.pipeline_mode<synchronous>, transform_indices = @transform_3, window_bounds = array<i64: 32, 128>}, {pipeline_mode = #tpu.pipeline_mode<synchronous>, transform_indices = @transform_4, window_bounds = array<i64: 1, 128>}, {pipeline_mode = #tpu.pipeline_mode<synchronous>, transform_indices = @transform_5, window_bounds = array<i64: 128, 96>}, {pipeline_mode = #tpu.pipeline_mode<synchronous>, transform_indices = @transform_6, window_bounds = array<i64: 1, 96>}, {transform_indices = @transform_7, window_bounds = array<i64: 16, 32>}, {transform_indices = @transform_8, window_bounds = array<i64: 16, 32>}, {transform_indices = @transform_9, window_bounds = array<i64: 16, 32>}]} {
    %c0 = arith.constant 0 : index
    %c0_0 = arith.constant 0 : index
    %0 = vector.load %arg1[%c0, %c0_0] : memref<16x32xbf16, #tpu.memory_space<vmem>>, vector<16x32xbf16>
    %c0_1 = arith.constant 0 : index
    %c0_2 = arith.constant 0 : index
    %1 = vector.load %arg2[%c0_1, %c0_2] : memref<32x96xbf16, #tpu.memory_space<vmem>>, vector<32x96xbf16>
    %cst = arith.constant dense<0.000000e+00> : vector<16x96xf32>
    %2 = tpu.matmul %0, %1, %cst {dimension_numbers = #tpu.dot_dimension_numbers<[1], [0], [0], [1], [0, 0, 1, 1], [], []>} : vector<16x32xbf16>, vector<32x96xbf16>, vector<16x96xf32> -> vector<16x96xf32>
    %c0_3 = arith.constant 0 : index
    %c0_4 = arith.constant 0 : index
    %3 = vector.load %arg3[%c0_3, %c0_4] : memref<1x96xf32, #tpu.memory_space<vmem>>, vector<1x96xf32>
    %4 = vector.broadcast %3 : vector<1x96xf32> to vector<16x96xf32>
    %5 = arith.addf %2, %4 : vector<16x96xf32>
    %c0_5 = arith.constant 0 : index
    %c0_6 = arith.constant 0 : index
    %6 = vector.load %arg4[%c0_5, %c0_6] : memref<32x128xbf16, #tpu.memory_space<vmem>>, vector<32x128xbf16>
    %cst_7 = arith.constant dense<0.000000e+00> : vector<16x128xf32>
    %7 = tpu.matmul %0, %6, %cst_7 {dimension_numbers = #tpu.dot_dimension_numbers<[1], [0], [0], [1], [0, 0, 1, 1], [], []>} : vector<16x32xbf16>, vector<32x128xbf16>, vector<16x128xf32> -> vector<16x128xf32>
    %c0_8 = arith.constant 0 : index
    %c0_9 = arith.constant 0 : index
    %8 = vector.load %arg5[%c0_8, %c0_9] : memref<1x128xf32, #tpu.memory_space<vmem>>, vector<1x128xf32>
    %9 = vector.broadcast %8 : vector<1x128xf32> to vector<16x128xf32>
    %10 = arith.addf %7, %9 : vector<16x128xf32>
    %cst_10 = arith.constant 0.000000e+00 : f32
    %11 = vector.broadcast %cst_10 : f32 to vector<16x128xf32>
    %12 = arith.maximumf %10, %11 : vector<16x128xf32>
    %13 = arith.truncf %12 : vector<16x128xf32> to vector<16x128xbf16>
    %c0_11 = arith.constant 0 : index
    %c0_12 = arith.constant 0 : index
    %14 = vector.load %arg6[%c0_11, %c0_12] : memref<128x96xbf16, #tpu.memory_space<vmem>>, vector<128x96xbf16>
    %cst_13 = arith.constant dense<0.000000e+00> : vector<16x96xf32>
    %15 = tpu.matmul %13, %14, %cst_13 {dimension_numbers = #tpu.dot_dimension_numbers<[1], [0], [0], [1], [0, 0, 1, 1], [], []>} : vector<16x128xbf16>, vector<128x96xbf16>, vector<16x96xf32> -> vector<16x96xf32>
    %c0_14 = arith.constant 0 : index
    %c0_15 = arith.constant 0 : index
    %16 = vector.load %arg7[%c0_14, %c0_15] : memref<1x96xf32, #tpu.memory_space<vmem>>, vector<1x96xf32>
    %17 = vector.broadcast %16 : vector<1x96xf32> to vector<16x96xf32>
    %18 = arith.addf %15, %17 : vector<16x96xf32>
    %19 = arith.addf %5, %18 : vector<16x96xf32>
    %20 = vector.extract_strided_slice %19 {offsets = [0, 0], sizes = [16, 32], strides = [1, 1]} : vector<16x96xf32> to vector<16x32xf32>
    %21 = arith.truncf %20 : vector<16x32xf32> to vector<16x32xbf16>
    %c0_16 = arith.constant 0 : index
    %c0_17 = arith.constant 0 : index
    %22 = vector.load %arg8[%c0_16, %c0_17] : memref<16x32xbf16, #tpu.memory_space<vmem>>, vector<16x32xbf16>
    tpu.vector_store %arg8[%c0_16, %c0_17], %21 {strides = array<i32>} : memref<16x32xbf16, #tpu.memory_space<vmem>>, vector<16x32xbf16>,
    %23 = vector.extract_strided_slice %19 {offsets = [0, 32], sizes = [16, 32], strides = [1, 1]} : vector<16x96xf32> to vector<16x32xf32>
    %24 = arith.truncf %23 : vector<16x32xf32> to vector<16x32xbf16>
    %c0_18 = arith.constant 0 : index
    %c0_19 = arith.constant 0 : index
    %25 = vector.load %arg9[%c0_18, %c0_19] : memref<16x32xbf16, #tpu.memory_space<vmem>>, vector<16x32xbf16>
    tpu.vector_store %arg9[%c0_18, %c0_19], %24 {strides = array<i32>} : memref<16x32xbf16, #tpu.memory_space<vmem>>, vector<16x32xbf16>,
    %26 = vector.extract_strided_slice %19 {offsets = [0, 64], sizes = [16, 32], strides = [1, 1]} : vector<16x96xf32> to vector<16x32xf32>
    %27 = arith.truncf %26 : vector<16x32xf32> to vector<16x32xbf16>
    %c0_20 = arith.constant 0 : index
    %c0_21 = arith.constant 0 : index
    %28 = vector.load %arg10[%c0_20, %c0_21] : memref<16x32xbf16, #tpu.memory_space<vmem>>, vector<16x32xbf16>
    tpu.vector_store %arg10[%c0_20, %c0_21], %27 {strides = array<i32>} : memref<16x32xbf16, #tpu.memory_space<vmem>>, vector<16x32xbf16>,
    return
  }
  func.func @transform_0(%arg0: i32) -> (i32, i32) {
    %c0_i32 = arith.constant 0 : i32
    %c0_i32_0 = arith.constant 0 : i32
    return %arg0, %c0_i32 : i32, i32
  }
  func.func @transform_1(%arg0: i32) -> (i32, i32) {
    %c0_i32 = arith.constant 0 : i32
    %c0_i32_0 = arith.constant 0 : i32
    %c0_i32_1 = arith.constant 0 : i32
    return %c0_i32, %c0_i32_0 : i32, i32
  }
  func.func @transform_2(%arg0: i32) -> (i32, i32) {
    %c0_i32 = arith.constant 0 : i32
    %c0_i32_0 = arith.constant 0 : i32
    %c0_i32_1 = arith.constant 0 : i32
    return %c0_i32, %c0_i32_0 : i32, i32
  }
  func.func @transform_3(%arg0: i32) -> (i32, i32) {
    %c0_i32 = arith.constant 0 : i32
    %c0_i32_0 = arith.constant 0 : i32
    %c0_i32_1 = arith.constant 0 : i32
    return %c0_i32, %c0_i32_0 : i32, i32
  }
  func.func @transform_4(%arg0: i32) -> (i32, i32) {
    %c0_i32 = arith.constant 0 : i32
    %c0_i32_0 = arith.constant 0 : i32
    %c0_i32_1 = arith.constant 0 : i32
    return %c0_i32, %c0_i32_0 : i32, i32
  }
  func.func @transform_5(%arg0: i32) -> (i32, i32) {
    %c0_i32 = arith.constant 0 : i32
    %c0_i32_0 = arith.constant 0 : i32
    %c0_i32_1 = arith.constant 0 : i32
    return %c0_i32, %c0_i32_0 : i32, i32
  }
  func.func @transform_6(%arg0: i32) -> (i32, i32) {
    %c0_i32 = arith.constant 0 : i32
    %c0_i32_0 = arith.constant 0 : i32
    %c0_i32_1 = arith.constant 0 : i32
    return %c0_i32, %c0_i32_0 : i32, i32
  }
  func.func @transform_7(%arg0: i32) -> (i32, i32) {
    %c0_i32 = arith.constant 0 : i32
    %c0_i32_0 = arith.constant 0 : i32
    return %arg0, %c0_i32 : i32, i32
  }
  func.func @transform_8(%arg0: i32) -> (i32, i32) {
    %c0_i32 = arith.constant 0 : i32
    %c0_i32_0 = arith.constant 0 : i32
    return %arg0, %c0_i32 : i32, i32
  }
  func.func @transform_9(%arg0: i32) -> (i32, i32) {
    %c0_i32 = arith.constant 0 : i32
    %c0_i32_0 = arith.constant 0 : i32
    return %arg0, %c0_i32 : i32, i32
  }
}

</mosaic_0001>

<llo_original>
// kernel: tpu_custom_call.1
$region0: #{tpu_custom_call.1}
  #allocation0 [shape = 'u32[]', space=smem, size = 0x4, offset = 0x4, fixed_abs, tag = 'smem constant byte address 0x4 - core index']
  #allocation1 [shape = 'u32[144,128]{1,0:T(1,128)}', space=vmem, size = 0x12000, scoped, tag = 'internal scratch']
  %s0 = inlined_call_operand.hbm [shape: bf16[16,32], index: 0, kind: input, shape index: {}]
  %s1 = inlined_call_operand.hbm [shape: bf16[32,96], index: 1, kind: input, shape index: {}]
  %s2 = inlined_call_operand.hbm [shape: f32[1,96], index: 2, kind: input, shape index: {}]
  %s3 = inlined_call_operand.hbm [shape: bf16[32,128], index: 3, kind: input, shape index: {}]
  %s4 = inlined_call_operand.hbm [shape: f32[1,128], index: 4, kind: input, shape index: {}]
  %s5 = inlined_call_operand.hbm [shape: bf16[128,96], index: 5, kind: input, shape index: {}]
  %s6 = inlined_call_operand.hbm [shape: f32[1,96], index: 6, kind: input, shape index: {}]
  %s7 = inlined_call_operand.hbm [shape: bf16[16,32], index: 7, kind: output, shape index: {0}]
  %s8 = inlined_call_operand.hbm [shape: bf16[16,32], index: 8, kind: output, shape index: {1}]
  %s9 = inlined_call_operand.hbm [shape: bf16[16,32], index: 9, kind: output, shape index: {2}]
  %10 = xla_tuple %s7, %s8, %s9
  %s11 = sld [smem:[#allocation0]]
  $region82: #{tpu_custom_call.1} parent=0
    _
  %s13 = ssub.s32 1, %s11
  %s14 = scalar_select 0, %s13, %s11
  $region1: #{tpu_custom_call.1} parent=0
    #allocation2 [shape = 'u8[4096]{0}', space=vmem, size = 0x1000, scoped, tag = 'input window, operand 0, single buffered']
    #allocation3 [shape = 's32[1]{0}', space=sflag, size = 0x4, scoped, tag = 'scoped memory for tpu_custom_call.1']
    #allocation4 [shape = 's32[1]{0}', space=sflag, size = 0x4, scoped, tag = 'scoped memory for tpu_custom_call.1']
    #allocation5 [shape = 'u8[8192]{0}', space=vmem, size = 0x2000, scoped, tag = 'input window, operand 1, single buffered']
    #allocation6 [shape = 's32[1]{0}', space=sflag, size = 0x4, scoped, tag = 'scoped memory for tpu_custom_call.1']
    #allocation7 [shape = 'u8[512]{0}', space=vmem, size = 0x400, scoped, tag = 'input window, operand 2, single buffered']
    #allocation8 [shape = 'u8[8192]{0}', space=vmem, size = 0x2000, scoped, tag = 'input window, operand 3, single buffered']
    #allocation9 [shape = 's32[1]{0}', space=sflag, size = 0x4, scoped, tag = 'scoped memory for tpu_custom_call.1']
    #allocation10 [shape = 'u8[512]{0}', space=vmem, size = 0x400, scoped, tag = 'input window, operand 4, single buffered']
    #allocation11 [shape = 'u8[32768]{0}', space=vmem, size = 0x8000, scoped, tag = 'input window, operand 5, single buffered']
    #allocation12 [shape = 's32[1]{0}', space=sflag, size = 0x4, scoped, tag = 'scoped memory for tpu_custom_call.1']
    #allocation13 [shape = 'u8[512]{0}', space=vmem, size = 0x400, scoped, tag = 'input window, operand 6, single buffered']
    #allocation14 [shape = 'u8[4096]{0}', space=vmem, size = 0x1000, scoped, tag = 'output window, operand 0, single buffered']
    #allocation15 [shape = 'u8[4096]{0}', space=vmem, size = 0x1000, scoped, tag = 'output window, operand 1, single buffered']
    #allocation16 [shape = 's32[1]{0}', space=sflag, size = 0x4, scoped, tag = 'scoped memory for tpu_custom_call.1']
    #allocation17 [shape = 'u8[4096]{0}', space=vmem, size = 0x1000, scoped, tag = 'output window, operand 2, single buffered']
    %15 = vsyncpa [#allocation3], 0
    %16 = vsyncpa [#allocation6], 0
    %17 = vsyncpa [#allocation9], 0
    %18 = vsyncpa [#allocation12], 0
    %19 = vsyncpa [#allocation4], 0
    %20 = vsyncpa [#allocation16], 0
    // Predicated region
    $region2: #{tpu_custom_call.1} parent=1 // pred_check
      _
    $region3: #{tpu_custom_call.1} parent=1 // pred_check_branch
      %22 = sbr.rel (0) target = $region5
    $region4: #{tpu_custom_call.1} parent=1 // pred_region
      %s24 = ssub.s32 128, 128
      %25 = vsyncadd [#allocation3], %s24
      %s26 = sshll.u32 [#allocation2], 4
      %s27 = int_to_ptr.vmem [resolvable:$true] %s26
      %32 = dma.hbm_to_vmem [thread:$0]  %s0, 128, %s27, [#allocation3], 64, 64, 4
    $region5: #{tpu_custom_call.1} parent=1 // pred_fallthru
      _
    // Predicated region
    $region6: #{tpu_custom_call.1} parent=1 // pred_check
      _
    $region7: #{tpu_custom_call.1} parent=1 // pred_check_branch
      %34 = sbr.rel (0) target = $region9
    $region8: #{tpu_custom_call.1} parent=1 // pred_region
      %s36 = ssub.s32 256, 256
      %37 = vsyncadd [#allocation6], %s36
      %s38 = sshll.u32 [#allocation5], 4
      %s39 = int_to_ptr.vmem [resolvable:$true] %s38
      %44 = dma.hbm_to_vmem [thread:$0]  %s1, 256, %s39, [#allocation6], 64, 64, 4
    $region9: #{tpu_custom_call.1} parent=1 // pred_fallthru
      _
    // Predicated region
    $region10: #{tpu_custom_call.1} parent=1 // pred_check
      _
    $region11: #{tpu_custom_call.1} parent=1 // pred_check_branch
      %46 = sbr.rel (0) target = $region13
    $region12: #{tpu_custom_call.1} parent=1 // pred_region
      %s48 = ssub.s32 16, 16
      %49 = vsyncadd [#allocation6], %s48
      %s51 = sshll.u32 [#allocation7], 4
      %s52 = int_to_ptr.vmem [resolvable:$true] %s51
      %54 = dma.hbm_to_vmem [thread:$0]  %s2, 16, %s52, [#allocation6]
    $region13: #{tpu_custom_call.1} parent=1 // pred_fallthru
      _
    // Predicated region
    $region14: #{tpu_custom_call.1} parent=1 // pred_check
      _
    $region15: #{tpu_custom_call.1} parent=1 // pred_check_branch
      %56 = sbr.rel (0) target = $region17
    $region16: #{tpu_custom_call.1} parent=1 // pred_region
      %s58 = ssub.s32 256, 256
      %59 = vsyncadd [#allocation9], %s58
      %s60 = sshll.u32 [#allocation8], 4
      %s61 = int_to_ptr.vmem [resolvable:$true] %s60
      %66 = dma.hbm_to_vmem [thread:$0]  %s3, 256, %s61, [#allocation9], 64, 64, 4
    $region17: #{tpu_custom_call.1} parent=1 // pred_fallthru
      _
    // Predicated region
    $region18: #{tpu_custom_call.1} parent=1 // pred_check
      _
    $region19: #{tpu_custom_call.1} parent=1 // pred_check_branch
      %68 = sbr.rel (0) target = $region21
    $region20: #{tpu_custom_call.1} parent=1 // pred_region
      %s70 = ssub.s32 16, 16
      %71 = vsyncadd [#allocation9], %s70
      %s73 = sshll.u32 [#allocation10], 4
      %s74 = int_to_ptr.vmem [resolvable:$true] %s73
      %76 = dma.hbm_to_vmem [thread:$0]  %s4, 16, %s74, [#allocation9]
    $region21: #{tpu_custom_call.1} parent=1 // pred_fallthru
      _
    // Predicated region
    $region22: #{tpu_custom_call.1} parent=1 // pred_check
      _
    $region23: #{tpu_custom_call.1} parent=1 // pred_check_branch
      %78 = sbr.rel (0) target = $region25
    $region24: #{tpu_custom_call.1} parent=1 // pred_region
      %s80 = ssub.s32 1024, 1024
      %81 = vsyncadd [#allocation12], %s80
      %s82 = sshll.u32 [#allocation11], 4
      %s83 = int_to_ptr.vmem [resolvable:$true] %s82
      %88 = dma.hbm_to_vmem [thread:$0]  %s5, 1024, %s83, [#allocation12], 64, 64, 4
    $region25: #{tpu_custom_call.1} parent=1 // pred_fallthru
      _
    // Predicated region
    $region26: #{tpu_custom_call.1} parent=1 // pred_check
      _
    $region27: #{tpu_custom_call.1} parent=1 // pred_check_branch
      %90 = sbr.rel (0) target = $region29
    $region28: #{tpu_custom_call.1} parent=1 // pred_region
      %s92 = ssub.s32 16, 16
      %93 = vsyncadd [#allocation12], %s92
      %s95 = sshll.u32 [#allocation13], 4
      %s96 = int_to_ptr.vmem [resolvable:$true] %s95
      %98 = dma.hbm_to_vmem [thread:$0]  %s6, 16, %s96, [#allocation12]
    $region29: #{tpu_custom_call.1} parent=1 // pred_fallthru
      _
    // Predicated region
    $region30: #{tpu_custom_call.1} parent=1 // pred_check
      _
    $region31: #{tpu_custom_call.1} parent=1 // pred_check_branch
      %100 = sbr.rel (0) target = $region33
    $region32: #{tpu_custom_call.1} parent=1 // pred_region
      %101 = dma.done [#allocation3], 128
    $region33: #{tpu_custom_call.1} parent=1 // pred_fallthru
      _
    // Predicated region
    $region34: #{tpu_custom_call.1} parent=1 // pred_check
      _
    $region35: #{tpu_custom_call.1} parent=1 // pred_check_branch
      %103 = sbr.rel (0) target = $region37
    $region36: #{tpu_custom_call.1} parent=1 // pred_region
      %104 = dma.done [#allocation6], 256
    $region37: #{tpu_custom_call.1} parent=1 // pred_fallthru
      _
    // Predicated region
    $region38: #{tpu_custom_call.1} parent=1 // pred_check
      _
    $region39: #{tpu_custom_call.1} parent=1 // pred_check_branch
      %106 = sbr.rel (0) target = $region41
    $region40: #{tpu_custom_call.1} parent=1 // pred_region
      %107 = dma.done [#allocation6], 16
    $region41: #{tpu_custom_call.1} parent=1 // pred_fallthru
      _
    // Predicated region
    $region42: #{tpu_custom_call.1} parent=1 // pred_check
      _
    $region43: #{tpu_custom_call.1} parent=1 // pred_check_branch
      %109 = sbr.rel (0) target = $region45
    $region44: #{tpu_custom_call.1} parent=1 // pred_region
      %110 = dma.done [#allocation9], 256
    $region45: #{tpu_custom_call.1} parent=1 // pred_fallthru
      _
    // Predicated region
    $region46: #{tpu_custom_call.1} parent=1 // pred_check
      _
    $region47: #{tpu_custom_call.1} parent=1 // pred_check_branch
      %112 = sbr.rel (0) target = $region49
    $region48: #{tpu_custom_call.1} parent=1 // pred_region
      %113 = dma.done [#allocation9], 16
    $region49: #{tpu_custom_call.1} parent=1 // pred_fallthru
      _
    // Predicated region
    $region50: #{tpu_custom_call.1} parent=1 // pred_check
      _
    $region51: #{tpu_custom_call.1} parent=1 // pred_check_branch
      %115 = sbr.rel (0) target = $region53
    $region52: #{tpu_custom_call.1} parent=1 // pred_region
      %116 = dma.done [#allocation12], 1024
    $region53: #{tpu_custom_call.1} parent=1 // pred_fallthru
      _
    // Predicated region
    $region54: #{tpu_custom_call.1} parent=1 // pred_check
      _
    $region55: #{tpu_custom_call.1} parent=1 // pred_check_branch
      %118 = sbr.rel (0) target = $region57
    $region56: #{tpu_custom_call.1} parent=1 // pred_region
      %119 = dma.done [#allocation12], 16
    $region57: #{tpu_custom_call.1} parent=1 // pred_fallthru
      _
    %v121 = vld [vmem:[#allocation2] sm:$0xf]
    %v122 = vld [vmem:[#allocation2 + $0x4] sm:$0xf]
    %v123 = vld [vmem:[#allocation5] sm:$0xf]
    %v124 = vld [vmem:[#allocation5 + $0x4] sm:$0xf]
    %v125 = vld [vmem:[#allocation5 + $0x8] sm:$0xf]
    %v126 = vld [vmem:[#allocation5 + $0xc] sm:$0xf]
    %v127 = vld [vmem:[#allocation7] sm:$0x1]
    %v129 = vlaneseq
    %v130 = vshrl.u32 %v129, 7
    %v131 = vsub.s32 0, %v130
    %v132 = vrot.slane %v127, %v131
    %v136 = vunpack.c.l.b16 %v121
    %v137 = vunpack.c.l.b16 %v122
    %v138 = vpack.c.b16 %v137, %v136
    %v143 = vunpack.c.l.b16 %v123
    %v144 = vunpack.c.l.b16 %v124
    %v145 = vunpack.c.l.b16 %v125
    %v146 = vunpack.c.l.b16 %v126
    %v147 = vpack.c.b16 %v144, %v143
    %v148 = vpack.c.b16 %v146, %v145
    %vm151 = vcmask 261120
    %v153 = vsel %vm151, %v138, 0
    %155 = vmatprep.subr.bf16.mxu0 0
    %156 = vmatpush1.bf16.msra.mxu0 %v147
    %157 = vmatprep.subr.bf16.mxu0 0
    %158 = vmatpush1.bf16.msra.mxu0 %v148
    %159 = vmatprep.subr.bf16.mxu0 0
    %160 = vmatpush1.bf16.msra.mxu0 0
    %161 = vmatprep.subr.bf16.mxu0 0
    %162 = vmatpush1.bf16.msra.mxu0 0
    %163 = vmatprep.subr.bf16.mxu0 0
    %164 = vmatpush1.bf16.msra.mxu0 0
    %165 = vmatprep.subr.bf16.mxu0 0
    %166 = vmatpush1.bf16.msra.mxu0 0
    %167 = vmatprep.subr.bf16.mxu0 0
    %168 = vmatpush1.bf16.msra.mxu0 0
    %169 = vmatprep.subr.bf16.mxu0 0
    %170 = vmatpush1.bf16.msra.mxu0 0
    %171 = vmatprep.subr.bf16.mxu0 0
    %172 = vmatpush1.bf16.msra.mxu0 0
    %173 = vmatprep.subr.bf16.mxu0 0
    %174 = vmatpush1.bf16.msra.mxu0 0
    %175 = vmatprep.subr.bf16.mxu0 0
    %176 = vmatpush1.bf16.msra.mxu0 0
    %177 = vmatprep.subr.bf16.mxu0 0
    %178 = vmatpush1.bf16.msra.mxu0 0
    %179 = vmatprep.subr.bf16.mxu0 0
    %180 = vmatpush1.bf16.msra.mxu0 0
    %181 = vmatprep.subr.bf16.mxu0 0
    %182 = vmatpush1.bf16.msra.mxu0 0
    %183 = vmatprep.subr.bf16.mxu0 0
    %184 = vmatpush1.bf16.msra.mxu0 0
    %185 = vmatprep.subr.bf16.mxu0 0
    %186 = vmatpush1.bf16.msra.mxu0 0
    %187 = vmatprep.mubr.bf16.mxu0 0
    %188 = vmatmul.mubr.bf16.gmra.mrb[0].mxu0 %v153
    %v189 = vpop.f32.mrb[0].mxu0
    %v190 = vadd.f32 %v132, %v189
    %v191 = vpop.f32.mrb[0].mxu0
    %v192 = vpop.f32.mrb[0].mxu0
    %v193 = vadd.f32 %v132, %v192
    %v194 = vpop.f32.mrb[0].mxu0
    %195 = vdwg.mxu0
    %v196 = vld [vmem:[#allocation8] sm:$0xf]
    %v197 = vld [vmem:[#allocation8 + $0x4] sm:$0xf]
    %v198 = vld [vmem:[#allocation8 + $0x8] sm:$0xf]
    %v199 = vld [vmem:[#allocation8 + $0xc] sm:$0xf]
    %v200 = vld [vmem:[#allocation10] sm:$0x1]
    %v202 = vlaneseq
    %v203 = vshrl.u32 %v202, 7
    %v204 = vsub.s32 0, %v203
    %v205 = vrot.slane %v200, %v204
    %v211 = vunpack.c.l.b16 %v196
    %v212 = vunpack.c.l.b16 %v197
    %v213 = vunpack.c.l.b16 %v198
    %v214 = vunpack.c.l.b16 %v199
    %v215 = vpack.c.b16 %v212, %v211
    %v216 = vpack.c.b16 %v214, %v213
    %219 = vmatprep.subr.bf16.mxu0 0
    %220 = vmatpush1.bf16.msra.mxu0 %v215
    %221 = vmatprep.subr.bf16.mxu0 0
    %222 = vmatpush1.bf16.msra.mxu0 %v216
    %223 = vmatprep.subr.bf16.mxu0 0
    %224 = vmatpush1.bf16.msra.mxu0 0
    %225 = vmatprep.subr.bf16.mxu0 0
    %226 = vmatpush1.bf16.msra.mxu0 0
    %227 = vmatprep.subr.bf16.mxu0 0
    %228 = vmatpush1.bf16.msra.mxu0 0
    %229 = vmatprep.subr.bf16.mxu0 0
    %230 = vmatpush1.bf16.msra.mxu0 0
    %231 = vmatprep.subr.bf16.mxu0 0
    %232 = vmatpush1.bf16.msra.mxu0 0
    %233 = vmatprep.subr.bf16.mxu0 0
    %234 = vmatpush1.bf16.msra.mxu0 0
    %235 = vmatprep.subr.bf16.mxu0 0
    %236 = vmatpush1.bf16.msra.mxu0 0
    %237 = vmatprep.subr.bf16.mxu0 0
    %238 = vmatpush1.bf16.msra.mxu0 0
    %239 = vmatprep.subr.bf16.mxu0 0
    %240 = vmatpush1.bf16.msra.mxu0 0
    %241 = vmatprep.subr.bf16.mxu0 0
    %242 = vmatpush1.bf16.msra.mxu0 0
    %243 = vmatprep.subr.bf16.mxu0 0
    %244 = vmatpush1.bf16.msra.mxu0 0
    %245 = vmatprep.subr.bf16.mxu0 0
    %246 = vmatpush1.bf16.msra.mxu0 0
    %247 = vmatprep.subr.bf16.mxu0 0
    %248 = vmatpush1.bf16.msra.mxu0 0
    %249 = vmatprep.subr.bf16.mxu0 0
    %250 = vmatpush1.bf16.msra.mxu0 0
    %251 = vmatprep.mubr.bf16.mxu0 0
    %252 = vmatmul.mubr.bf16.gmra.mrb[0].mxu0 %v153
    %v253 = vpop.f32.mrb[0].mxu0
    %v254 = vadd.f32 %v205, %v253
    %v255 = vpop.f32.mrb[0].mxu0
    %v256 = vpop.f32.mrb[0].mxu0
    %v257 = vadd.f32 %v205, %v256
    %v258 = vpop.f32.mrb[0].mxu0
    %259 = vdwg.mxu0
    %v260 = vmax.f32 %v254, 0.0
    %v261 = vmax.f32 %v257, 0.0
    %v262 = vpack.c.bf16 %v261, %v260
    %v263 = vld [vmem:[#allocation11] sm:$0xf]
    %v264 = vld [vmem:[#allocation11 + $0x4] sm:$0xf]
    %v265 = vld [vmem:[#allocation11 + $0x8] sm:$0xf]
    %v266 = vld [vmem:[#allocation11 + $0xc] sm:$0xf]
    %v267 = vld [vmem:[#allocation11 + $0x10] sm:$0xf]
    %v268 = vld [vmem:[#allocation11 + $0x14] sm:$0xf]
    %v269 = vld [vmem:[#allocation11 + $0x18] sm:$0xf]
    %v270 = vld [vmem:[#allocation11 + $0x1c] sm:$0xf]
    %v271 = vld [vmem:[#allocation11 + $0x20] sm:$0xf]
    %v272 = vld [vmem:[#allocation11 + $0x24] sm:$0xf]
    %v273 = vld [vmem:[#allocation11 + $0x28] sm:$0xf]
    %v274 = vld [vmem:[#allocation11 + $0x2c] sm:$0xf]
    %v275 = vld [vmem:[#allocation11 + $0x30] sm:$0xf]
    %v276 = vld [vmem:[#allocation11 + $0x34] sm:$0xf]
    %v277 = vld [vmem:[#allocation11 + $0x38] sm:$0xf]
    %v278 = vld [vmem:[#allocation11 + $0x3c] sm:$0xf]
    %v279 = vld [vmem:[#allocation13] sm:$0x1]
    %v281 = vlaneseq
    %v282 = vshrl.u32 %v281, 7
    %v283 = vsub.s32 0, %v282
    %v284 = vrot.slane %v279, %v283
    %v302 = vunpack.c.l.b16 %v263
    %v303 = vunpack.c.l.b16 %v264
    %v304 = vunpack.c.l.b16 %v265
    %v305 = vunpack.c.l.b16 %v266
    %v306 = vunpack.c.l.b16 %v267
    %v307 = vunpack.c.l.b16 %v268
    %v308 = vunpack.c.l.b16 %v269
    %v309 = vunpack.c.l.b16 %v270
    %v310 = vunpack.c.l.b16 %v271
    %v311 = vunpack.c.l.b16 %v272
    %v312 = vunpack.c.l.b16 %v273
    %v313 = vunpack.c.l.b16 %v274
    %v314 = vunpack.c.l.b16 %v275
    %v315 = vunpack.c.l.b16 %v276
    %v316 = vunpack.c.l.b16 %v277
    %v317 = vunpack.c.l.b16 %v278
    %v318 = vpack.c.b16 %v303, %v302
    %v319 = vpack.c.b16 %v305, %v304
    %v320 = vpack.c.b16 %v307, %v306
    %v321 = vpack.c.b16 %v309, %v308
    %v322 = vpack.c.b16 %v311, %v310
    %v323 = vpack.c.b16 %v313, %v312
    %v324 = vpack.c.b16 %v315, %v314
    %v325 = vpack.c.b16 %v317, %v316
    %334 = vmatprep.subr.bf16.mxu0 0
    %335 = vmatpush1.bf16.msra.mxu0 %v318
    %336 = vmatprep.subr.bf16.mxu0 0
    %337 = vmatpush1.bf16.msra.mxu0 %v319
    %338 = vmatprep.subr.bf16.mxu0 0
    %339 = vmatpush1.bf16.msra.mxu0 %v320
    %340 = vmatprep.subr.bf16.mxu0 0
    %341 = vmatpush1.bf16.msra.mxu0 %v321
    %342 = vmatprep.subr.bf16.mxu0 0
    %343 = vmatpush1.bf16.msra.mxu0 %v322
    %344 = vmatprep.subr.bf16.mxu0 0
    %345 = vmatpush1.bf16.msra.mxu0 %v323
    %346 = vmatprep.subr.bf16.mxu0 0
    %347 = vmatpush1.bf16.msra.mxu0 %v324
    %348 = vmatprep.subr.bf16.mxu0 0
    %349 = vmatpush1.bf16.msra.mxu0 %v325
    %350 = vmatprep.subr.bf16.mxu0 0
    %351 = vmatpush1.bf16.msra.mxu0 0
    %352 = vmatprep.subr.bf16.mxu0 0
    %353 = vmatpush1.bf16.msra.mxu0 0
    %354 = vmatprep.subr.bf16.mxu0 0
    %355 = vmatpush1.bf16.msra.mxu0 0
    %356 = vmatprep.subr.bf16.mxu0 0
    %357 = vmatpush1.bf16.msra.mxu0 0
    %358 = vmatprep.subr.bf16.mxu0 0
    %359 = vmatpush1.bf16.msra.mxu0 0
    %360 = vmatprep.subr.bf16.mxu0 0
    %361 = vmatpush1.bf16.msra.mxu0 0
    %362 = vmatprep.subr.bf16.mxu0 0
    %363 = vmatpush1.bf16.msra.mxu0 0
    %364 = vmatprep.subr.bf16.mxu0 0
    %365 = vmatpush1.bf16.msra.mxu0 0
    %366 = vmatprep.mubr.bf16.mxu0 0
    %367 = vmatmul.mubr.bf16.gmra.mrb[0].mxu0 %v262
    %v368 = vpop.f32.mrb[0].mxu0
    %v369 = vadd.f32 %v284, %v368
    %v370 = vpop.f32.mrb[0].mxu0
    %v371 = vpop.f32.mrb[0].mxu0
    %v372 = vadd.f32 %v284, %v371
    %v373 = vpop.f32.mrb[0].mxu0
    %374 = vdwg.mxu0
    %v375 = vadd.f32 %v190, %v369
    %v376 = vadd.f32 %v193, %v372
    %v377 = vpack.c.bf16 %v376, %v375
    %v379 = vunpack.c.l.b16 %v377
    %v380 = vunpack.c.h.b16 %v377
    %v381 = vpack.c.b16 %v379, %v379
    %v382 = vpack.c.b16 %v380, %v380
    %vm385 = vcmask 257024
    %386 = vst.msk [vmem:[#allocation14] sm:$0xf] %vm385, %v381
    %387 = vst.msk [vmem:[#allocation14 + $0x4] sm:$0xf] %vm385, %v382
    %388 = vrot.lane.b32.xlu0 %v381, 96
    %v389 = vpop.permute.xlu0 %388
    %390 = vrot.lane.b32.xlu0 %v382, 96
    %v391 = vpop.permute.xlu0 %390
    %394 = vst.msk [vmem:[#allocation15] sm:$0xf] %vm385, %v389
    %395 = vst.msk [vmem:[#allocation15 + $0x4] sm:$0xf] %vm385, %v391
    %396 = vrot.lane.b32.xlu0 %v381, 64
    %v397 = vpop.permute.xlu0 %396
    %398 = vrot.lane.b32.xlu0 %v382, 64
    %v399 = vpop.permute.xlu0 %398
    %402 = vst.msk [vmem:[#allocation17] sm:$0xf] %vm385, %v397
    %403 = vst.msk [vmem:[#allocation17 + $0x4] sm:$0xf] %vm385, %v399
    // Predicated region
    $region58: #{tpu_custom_call.1} parent=1 // pred_check
      _
    $region59: #{tpu_custom_call.1} parent=1 // pred_check_branch
      %405 = sbr.rel (0) target = $region61
    $region60: #{tpu_custom_call.1} parent=1 // pred_region
      %s407 = ssub.s32 128, 128
      %408 = vsyncadd [#allocation4], %s407
      %s409 = sshll.u32 [#allocation14], 4
      %s410 = int_to_ptr.vmem [resolvable:$true] %s409
      %415 = dma.vmem_to_hbm [thread:$0]  %s410, 128, %s7, [#allocation4], 64, 64, 4
    $region61: #{tpu_custom_call.1} parent=1 // pred_fallthru
      _
    // Predicated region
    $region62: #{tpu_custom_call.1} parent=1 // pred_check
      _
    $region63: #{tpu_custom_call.1} parent=1 // pred_check_branch
      %417 = sbr.rel (0) target = $region65
    $region64: #{tpu_custom_call.1} parent=1 // pred_region
      %s419 = ssub.s32 128, 128
      %420 = vsyncadd [#allocation16], %s419
      %s421 = sshll.u32 [#allocation15], 4
      %s422 = int_to_ptr.vmem [resolvable:$true] %s421
      %427 = dma.vmem_to_hbm [thread:$0]  %s422, 128, %s8, [#allocation16], 64, 64, 4
    $region65: #{tpu_custom_call.1} parent=1 // pred_fallthru
      _
    // Predicated region
    $region66: #{tpu_custom_call.1} parent=1 // pred_check
      _
    $region67: #{tpu_custom_call.1} parent=1 // pred_check_branch
      %429 = sbr.rel (0) target = $region69
    $region68: #{tpu_custom_call.1} parent=1 // pred_region
      %s431 = ssub.s32 128, 128
      %432 = vsyncadd [#allocation16], %s431
      %s433 = sshll.u32 [#allocation17], 4
      %s434 = int_to_ptr.vmem [resolvable:$true] %s433
      %439 = dma.vmem_to_hbm [thread:$0]  %s434, 128, %s9, [#allocation16], 64, 64, 4
    $region69: #{tpu_custom_call.1} parent=1 // pred_fallthru
      _
    // Predicated region
    $region70: #{tpu_custom_call.1} parent=1 // pred_check
      _
    $region71: #{tpu_custom_call.1} parent=1 // pred_check_branch
      %441 = sbr.rel (0) target = $region73
    $region72: #{tpu_custom_call.1} parent=1 // pred_region
      %442 = dma.done [#allocation4], 128
    $region73: #{tpu_custom_call.1} parent=1 // pred_fallthru
      _
    // Predicated region
    $region74: #{tpu_custom_call.1} parent=1 // pred_check
      _
    $region75: #{tpu_custom_call.1} parent=1 // pred_check_branch
      %444 = sbr.rel (0) target = $region77
    $region76: #{tpu_custom_call.1} parent=1 // pred_region
      %445 = dma.done [#allocation16], 128
    $region77: #{tpu_custom_call.1} parent=1 // pred_fallthru
      _
    // Predicated region
    $region78: #{tpu_custom_call.1} parent=1 // pred_check
      _
    $region79: #{tpu_custom_call.1} parent=1 // pred_check_branch
      %447 = sbr.rel (0) target = $region81
    $region80: #{tpu_custom_call.1} parent=1 // pred_region
      %448 = dma.done [#allocation16], 128
    $region81: #{tpu_custom_call.1} parent=1 // pred_fallthru
      _
    %449 = vsyncpa [#allocation3], 1
    %450 = vsyncpa [#allocation6], 1
    %451 = vsyncpa [#allocation9], 1
    %452 = vsyncpa [#allocation12], 1
    %453 = vsyncpa [#allocation4], 1
    %454 = vsyncpa [#allocation16], 1

</llo_original>
